<compile_context>
chip_gen: v7x
topology: tpu7x:2x2x1
jax: 0.10.0
libtpu: 0.0.40
codegen_flags: <defaults>
</compile_context>

<pallas_src>
import functools

import jax
import jax.numpy as jnp
from jax.experimental import pallas as pl
from jax.experimental.pallas import tpu as pltpu


def _round_up(n, m):
    return ((n + m - 1) // m) * m


def _attention_sigmoid_kernel(x_ref, w_ref, b_ref, out_ref):
    x = x_ref[...].astype(jnp.float32)                        # (TILE_N, L)
    w = w_ref[...].astype(jnp.float32)                        # (1, L)
    # Linear(L, 1) head on VPU (mul) + XLU (lane reduce): a (L, 1) MXU RHS
    # would use 1 of 256 columns, so keep the MXU out of it entirely.
    z = jnp.sum(x * w, axis=-1, keepdims=True) + b_ref[...]   # (TILE_N, 1)
    # sigmoid(z) = 0.5 * tanh(0.5 * z) + 0.5  -> one EUP op per element.
    gate = 0.5 * jnp.tanh(0.5 * z) + 0.5                      # (TILE_N, 1)
    out_ref[...] = (gate * x).astype(out_ref.dtype)           # lane-dense store


def _attention_softmax_kernel(x_ref, w_ref, b_ref, out_ref):
    x = x_ref[...].astype(jnp.float32)                        # (TILE_N, L)
    s = jnp.dot(x, w_ref[...], preferred_element_type=jnp.float32) + b_ref[...]
    s = s - jnp.max(s, axis=-1, keepdims=True)                # stable row softmax
    e = jnp.exp(s)
    p = e / jnp.sum(e, axis=-1, keepdims=True)
    out_ref[...] = (p * x).astype(out_ref.dtype)


def _choose_tile_n(n, l, itemsize):
    # Target ~4 MiB per streamed x tile: with double-buffered in + out and f32
    # intermediates this stays comfortably inside v7x's 64 MiB VMEM (and
    # trivially inside 128 MiB on v5e/v6e); >=512-row tiles amortize the
    # ~0.35 us/step grid overhead.
    budget = 4 * 1024 * 1024
    t = max(1, budget // max(1, l * itemsize))
    t = max(128, (t // 8) * 8)
    return min(t, _round_up(n, 8))


@functools.partial(jax.jit, static_argnames=("use_softmax", "tile_n"))
def attention_forward(x, w, b, *, use_softmax=False, tile_n=None):
    """Pallas equivalent of Attention.forward.

    x: (N, L) features.
    use_softmax=False: w is (1, L),  b is (1, 1)   [nn.Linear(L, 1)]
    use_softmax=True : w is (L, L) stored (in, out), b is (1, L).
    Returns attended features of shape (N, L).
    """
    n, l = x.shape
    itemsize = jnp.dtype(x.dtype).itemsize
    if tile_n is None:
        tile_n = _choose_tile_n(n, l, itemsize)
    n_pad = _round_up(n, tile_n)
    x_p = jnp.pad(x, ((0, n_pad - n), (0, 0))) if n_pad != n else x
    grid = (n_pad // tile_n,)

    kernel = _attention_softmax_kernel if use_softmax else _attention_sigmoid_kernel

    w_bytes = (w.size * jnp.dtype(w.dtype).itemsize
               + b.size * jnp.dtype(b.dtype).itemsize)
    io_bytes = 2 * n_pad * l * itemsize + w_bytes
    if use_softmax:
        flops = 2 * n_pad * l * l + 4 * n_pad * l
        transcendentals = n_pad * l
    else:
        flops = 3 * n_pad * l
        transcendentals = n_pad

    vmem_needed = (2 * tile_n * l * itemsize          # x  (double-buffered)
                   + 2 * tile_n * l * itemsize        # out (double-buffered)
                   + w_bytes
                   + 4 * tile_n * l * 4)              # f32 intermediates headroom
    vmem_limit = int(min(48 * 1024 * 1024, max(16 * 1024 * 1024, 2 * vmem_needed)))

    out = pl.pallas_call(
        kernel,
        out_shape=jax.ShapeDtypeStruct((n_pad, l), x.dtype),
        grid=grid,
        in_specs=[
            pl.BlockSpec((tile_n, l), lambda i: (i, 0)),        # streamed x
            pl.BlockSpec(w.shape, lambda i: (0, 0)),            # resident weight
            pl.BlockSpec(b.shape, lambda i: (0, 0)),            # resident bias
        ],
        out_specs=pl.BlockSpec((tile_n, l), lambda i: (i, 0)),  # lane-dense out
        compiler_params=pltpu.CompilerParams(
            dimension_semantics=("parallel",),
            vmem_limit_bytes=vmem_limit,
        ),
        cost_estimate=pl.CostEstimate(
            flops=int(flops),
            transcendentals=int(transcendentals),
            bytes_accessed=int(io_bytes),
        ),
    )(x_p, w, b)
    return out[:n] if n_pad != n else out


if __name__ == "__main__":
    # Small shapes consistent with the module: N instances of L-dim features.
    # N deliberately not a multiple of the (8,128) tiling to exercise padding.
    N, L = 13, 32

    key = jax.random.PRNGKey(0)
    kx, kw1, kb1, kw2, kb2 = jax.random.split(key, 5)
    x = jax.random.normal(kx, (N, L), jnp.float32)

    s = 1.0 / jnp.sqrt(L)

    # Default path: Linear(L, 1) + sigmoid gate.
    w_sig = jax.random.uniform(kw1, (1, L), jnp.float32, -s, s)
    b_sig = jax.random.uniform(kb1, (1, 1), jnp.float32, -s, s)
    out_sig = jax.block_until_ready(
        attention_forward(x, w_sig, b_sig, use_softmax=False))
    ref_sig = jax.nn.sigmoid(x @ w_sig.T + b_sig) * x
    assert out_sig.shape == (N, L)
    assert jnp.allclose(out_sig, ref_sig, atol=1e-4, rtol=1e-4)

    # use_softmax=True path: Linear(L, L) + softmax over dim=1.
    w_soft = jax.random.uniform(kw2, (L, L), jnp.float32, -s, s)  # (in, out)
    b_soft = jax.random.uniform(kb2, (1, L), jnp.float32, -s, s)
    out_soft = jax.block_until_ready(
        attention_forward(x, w_soft, b_soft, use_softmax=True))
    ref_soft = jax.nn.softmax(x @ w_soft + b_soft, axis=1) * x
    assert out_soft.shape == (N, L)
    assert jnp.allclose(out_soft, ref_soft, atol=1e-4, rtol=1e-4)

    print("KERNEL_OK")
</pallas_src>

<mosaic_0001>
module attributes {stable_mosaic.version = 11 : i64} {
  func.func @_attention_sigmoid_kernel(%arg0: i32, %arg1: memref<16x32xf32, #tpu.memory_space<vmem>>, %arg2: memref<1x32xf32, #tpu.memory_space<vmem>>, %arg3: memref<1x1xf32, #tpu.memory_space<vmem>>, %arg4: memref<16x32xf32, #tpu.memory_space<vmem>>) attributes {dimension_semantics = [#tpu.dimension_semantics<parallel>], iteration_bounds = array<i64: 1>, scalar_prefetch = 0 : i64, scratch_operands = 0 : i64, tpu.core_type = #tpu.core_type<tc>, window_params = [{transform_indices = @transform_0, window_bounds = array<i64: 16, 32>}, {pipeline_mode = #tpu.pipeline_mode<synchronous>, transform_indices = @transform_1, window_bounds = array<i64: 1, 32>}, {pipeline_mode = #tpu.pipeline_mode<synchronous>, transform_indices = @transform_2, window_bounds = array<i64: 1, 1>}, {transform_indices = @transform_3, window_bounds = array<i64: 16, 32>}]} {
    %c0 = arith.constant 0 : index
    %c0_0 = arith.constant 0 : index
    %0 = vector.load %arg1[%c0, %c0_0] : memref<16x32xf32, #tpu.memory_space<vmem>>, vector<16x32xf32>
    %c0_1 = arith.constant 0 : index
    %c0_2 = arith.constant 0 : index
    %1 = vector.load %arg2[%c0_1, %c0_2] : memref<1x32xf32, #tpu.memory_space<vmem>>, vector<1x32xf32>
    %2 = vector.broadcast %1 : vector<1x32xf32> to vector<16x32xf32>
    %3 = arith.mulf %0, %2 : vector<16x32xf32>
    %cst = arith.constant dense<0.000000e+00> : vector<16xf32>
    %4 = vector.multi_reduction <add>, %3, %cst [1] : vector<16x32xf32> to vector<16xf32>
    %5 = vector.shape_cast %4 : vector<16xf32> to vector<16x1xf32>
    %c0_3 = arith.constant 0 : index
    %c0_4 = arith.constant 0 : index
    %6 = vector.load %arg3[%c0_3, %c0_4] : memref<1x1xf32, #tpu.memory_space<vmem>>, vector<1x1xf32>
    %7 = vector.broadcast %6 : vector<1x1xf32> to vector<16x1xf32>
    %8 = arith.addf %5, %7 : vector<16x1xf32>
    %cst_5 = arith.constant 5.000000e-01 : f32
    %9 = vector.broadcast %cst_5 : f32 to vector<16x1xf32>
    %10 = arith.mulf %9, %8 : vector<16x1xf32>
    %11 = math.tanh %10 : vector<16x1xf32>
    %cst_6 = arith.constant 5.000000e-01 : f32
    %12 = vector.broadcast %cst_6 : f32 to vector<16x1xf32>
    %13 = arith.mulf %12, %11 : vector<16x1xf32>
    %cst_7 = arith.constant 5.000000e-01 : f32
    %14 = vector.broadcast %cst_7 : f32 to vector<16x1xf32>
    %15 = arith.addf %13, %14 : vector<16x1xf32>
    %16 = vector.broadcast %15 : vector<16x1xf32> to vector<16x32xf32>
    %17 = arith.mulf %16, %0 : vector<16x32xf32>
    %c0_8 = arith.constant 0 : index
    %c0_9 = arith.constant 0 : index
    %18 = vector.load %arg4[%c0_8, %c0_9] : memref<16x32xf32, #tpu.memory_space<vmem>>, vector<16x32xf32>
    tpu.vector_store %arg4[%c0_8, %c0_9], %17 {strides = array<i32>} : memref<16x32xf32, #tpu.memory_space<vmem>>, vector<16x32xf32>,
    return
  }
  func.func @transform_0(%arg0: i32) -> (i32, i32) {
    %c0_i32 = arith.constant 0 : i32
    %c0_i32_0 = arith.constant 0 : i32
    return %arg0, %c0_i32 : i32, i32
  }
  func.func @transform_1(%arg0: i32) -> (i32, i32) {
    %c0_i32 = arith.constant 0 : i32
    %c0_i32_0 = arith.constant 0 : i32
    %c0_i32_1 = arith.constant 0 : i32
    return %c0_i32, %c0_i32_0 : i32, i32
  }
  func.func @transform_2(%arg0: i32) -> (i32, i32) {
    %c0_i32 = arith.constant 0 : i32
    %c0_i32_0 = arith.constant 0 : i32
    %c0_i32_1 = arith.constant 0 : i32
    return %c0_i32, %c0_i32_0 : i32, i32
  }
  func.func @transform_3(%arg0: i32) -> (i32, i32) {
    %c0_i32 = arith.constant 0 : i32
    %c0_i32_0 = arith.constant 0 : i32
    return %arg0, %c0_i32 : i32, i32
  }
}

</mosaic_0001>

<llo_original>
// kernel: attention_forward.1
$region0: #{attention_forward.1}
  #allocation0 [shape = 'u32[]', space=smem, size = 0x4, offset = 0x4, fixed_abs, tag = 'smem constant byte address 0x4 - core index']
  #allocation1 [shape = 'u32[144,128]{1,0:T(1,128)}', space=vmem, size = 0x12000, scoped, tag = 'internal scratch']
  #allocation2 [shape = 'f32[1,1]{1,0:T(1,128)S(1)}', space=vmem, size = 0x200, scoped, tag = 'scoped memory for attention_forward.1']
  %s0 = inlined_call_operand.vmem [shape: f32[16,32], index: 0, kind: input, shape index: {}]
  %s1 = inlined_call_operand.vmem [shape: f32[1,32], index: 1, kind: input, shape index: {}]
  %s2 = inlined_call_operand.<no memory space> [shape: f32[1,1], index: 2, kind: input, shape index: {}]
  %s3 = inlined_call_operand.hbm [shape: f32[16,32], index: 3, kind: output, shape index: {}]
  %s4 = sld [smem:[#allocation0]]
  $region22: #{attention_forward.1} parent=0
    _
  %s6 = ssub.s32 1, %s4
  %s7 = scalar_select 0, %s6, %s4
  %v8 = vstv %s2
  %9 = vst [vmem:[#allocation2] sm:$0x1] %v8
  $region1: #{attention_forward.1} parent=0
    #allocation3 [shape = 'u8[8192]{0}', space=vmem, size = 0x2000, scoped, tag = 'output window, operand 0, single buffered']
    #allocation4 [shape = 's32[1]{0}', space=sflag, size = 0x4, scoped, tag = 'scoped memory for attention_forward.1']
    %10 = vsyncpa [#allocation4], 0
    // Predicated region
    $region2: #{attention_forward.1} parent=1 // pred_check
      _
    $region3: #{attention_forward.1} parent=1 // pred_check_branch
      %12 = sbr.rel (0) target = $region5
    $region4: #{attention_forward.1} parent=1 // pred_region
      _
    $region5: #{attention_forward.1} parent=1 // pred_fallthru
      _
    // Predicated region
    $region6: #{attention_forward.1} parent=1 // pred_check
      _
    $region7: #{attention_forward.1} parent=1 // pred_check_branch
      %14 = sbr.rel (0) target = $region9
    $region8: #{attention_forward.1} parent=1 // pred_region
      _
    $region9: #{attention_forward.1} parent=1 // pred_fallthru
      _
    // Predicated region
    $region10: #{attention_forward.1} parent=1 // pred_check
      _
    $region11: #{attention_forward.1} parent=1 // pred_check_branch
      %16 = sbr.rel (0) target = $region13
    $region12: #{attention_forward.1} parent=1 // pred_region
      _
    $region13: #{attention_forward.1} parent=1 // pred_fallthru
      _
    %v17 = vld [vmem:[%s0] sm:$0xff]
    %v18 = vld [vmem:[%s0 + $0x8] sm:$0xff]
    %v19 = vld [vmem:[%s1] sm:$0x1]
    %v21 = vlaneseq
    %v22 = vshrl.u32 %v21, 7
    %v23 = vsub.s32 0, %v22
    %v24 = vrot.slane %v19, %v23
    %v26 = vmul.f32 %v17, %v24
    %v27 = vmul.f32 %v18, %v24
    %vm28 = vcmask 261120
    %v29 = vsel %vm28, %v26, 0.0
    %30 = vadd.xlane.f32.xlu0 %v29
    %v31 = vpop.xlane.xlu0 %30
    %v32 = vsel %vm28, %v27, 0.0
    %33 = vadd.xlane.f32.xlu0 %v32
    %v34 = vpop.xlane.xlu0 %33
    %v35 = vld [vmem:[#allocation2] sm:$0x1]
    %v37 = vlaneseq
    %v38 = vshrl.u32 %v37, 7
    %v39 = vsub.s32 0, %v38
    %v40 = vrot.slane %v35, %v39
    %v42 = vadd.f32 %v31, %v40
    %v43 = vadd.f32 %v34, %v40
    %v44 = vmul.f32 %v42, 0.5
    %v45 = vmul.f32 %v43, 0.5
    %v46 = vtanh.pop %v44
    %v47 = vtanh.pop %v45
    %v48 = vmul.f32 %v46, 0.5
    %v49 = vmul.f32 %v47, 0.5
    %v50 = vadd.f32 %v48, 0.5
    %v51 = vadd.f32 %v49, 0.5
    %53 = vset.pattern.permute.xlu0 0
    %54 = vperm.xlu0 %53, %v50
    %v55 = vpop.permute.xlu0 %54
    %58 = vset.pattern.permute.xlu0 0
    %59 = vperm.xlu0 %58, %v51
    %v60 = vpop.permute.xlu0 %59
    %v62 = vmul.f32 %v55, %v17
    %v63 = vmul.f32 %v60, %v18
    %64 = vst.msk [vmem:[#allocation3] sm:$0xff] %vm28, %v62
    %65 = vst.msk [vmem:[#allocation3 + $0x8] sm:$0xff] %vm28, %v63
    // Predicated region
    $region14: #{attention_forward.1} parent=1 // pred_check
      _
    $region15: #{attention_forward.1} parent=1 // pred_check_branch
      %67 = sbr.rel (0) target = $region17
    $region16: #{attention_forward.1} parent=1 // pred_region
      %s69 = ssub.s32 256, 256
      %70 = vsyncadd [#allocation4], %s69
      %s71 = sshll.u32 [#allocation3], 4
      %s72 = int_to_ptr.vmem [resolvable:$true] %s71
      %77 = dma.vmem_to_hbm [thread:$0]  %s72, 256, %s3, [#allocation4], 128, 128, 8
    $region17: #{attention_forward.1} parent=1 // pred_fallthru
      _
    // Predicated region
    $region18: #{attention_forward.1} parent=1 // pred_check
      _
    $region19: #{attention_forward.1} parent=1 // pred_check_branch
      %79 = sbr.rel (0) target = $region21
    $region20: #{attention_forward.1} parent=1 // pred_region
      %80 = dma.done [#allocation4], 256
    $region21: #{attention_forward.1} parent=1 // pred_fallthru
      _
    %81 = vsyncpa [#allocation4], 1

</llo_original>
